<compile_context>
chip_gen: v5e
topology: v5e:2x2
jax: 0.10.0
libtpu: 0.0.40
codegen_flags: <defaults>
</compile_context>

<pallas_src>
import jax
import jax.numpy as jnp
from jax.experimental import pallas as pl
from jax.experimental.pallas import tpu as pltpu


def _make_temporal_block_kernel(K, dilation, padding, P, tl, has_downsample):
    """One (C_out, tl) output tile for one batch element.

    Refs (downsample case):
      xa_ref : (1, C_in, tl)    bf16  window part A = xp[:, :, j*tl : j*tl + tl]
      xb_ref : (1, C_in, P)     bf16  window part B = xp[:, :, (j+1)*tl : (j+1)*tl + P]
      w_ref  : (C_out, K*C_in)  bf16  conv1 weights flattened as [tap-major, in-ch]
      wd_ref : (C_out, C_in)    bf16  1x1 residual conv weight (downsample case only)
      b1_ref : (C_out, 1)       f32
      bd_ref : (C_out, 1)       f32   (downsample case only)
      o_ref  : (1, C_out, tl)   out dtype

    The concatenated window [A | B] covers original-x time columns
    [j*tl - P, (j+1)*tl); tap t starts at static local offset P - padding + t*dilation,
    and tap K-1 (offset P) is exactly the current sample x[:, j*tl + i] used by the
    residual branch.
    """
    offs = [P - padding + t * dilation for t in range(K)]

    def build_taps(xa_ref, xb_ref):
        xa = xa_ref[0, :, :]                              # (C_in, tl)   bf16
        xb = xb_ref[0, :, :]                              # (C_in, P)    bf16
        pieces = []
        for off in offs:                                  # K is small & static -> unrolled
            if off == 0:
                pieces.append(xa)
            elif off == tl:                               # only possible when tl == P
                pieces.append(xb)
            else:
                pieces.append(jnp.concatenate([xa[:, off:], xb[:, :off]], axis=-1))
        # Single stacked-tap slab -> one fused MXU contraction of depth K*C_in.
        slab = pieces[0] if K == 1 else jnp.concatenate(pieces, axis=0)   # (K*C_in, tl)
        return slab, pieces[K - 1]                        # pieces[K-1] == current sample

    if has_downsample:
        def kernel(xa_ref, xb_ref, w_ref, wd_ref, b1_ref, bd_ref, o_ref):
            slab, cur = build_taps(xa_ref, xb_ref)
            conv = jnp.dot(w_ref[...], slab, preferred_element_type=jnp.float32)
            conv = jnp.maximum(conv + b1_ref[...], 0.0)           # chomp'd conv1 + relu1
            res = jnp.dot(wd_ref[...], cur,
                          preferred_element_type=jnp.float32) + bd_ref[...]
            o_ref[0, :, :] = jnp.maximum(conv + res, 0.0).astype(o_ref.dtype)
    else:
        def kernel(xa_ref, xb_ref, w_ref, b1_ref, o_ref):
            slab, cur = build_taps(xa_ref, xb_ref)
            conv = jnp.dot(w_ref[...], slab, preferred_element_type=jnp.float32)
            conv = jnp.maximum(conv + b1_ref[...], 0.0)           # chomp'd conv1 + relu1
            # TODO(synk): identity residual uses the bf16-rounded input tile; feed a
            # separate f32 residual stream if tighter parity with PyTorch f32 is needed.
            res = cur.astype(jnp.float32)
            o_ref[0, :, :] = jnp.maximum(conv + res, 0.0).astype(o_ref.dtype)

    return kernel


def temporal_block_forward(x, params, *, kernel_size, stride, padding, dilation,
                           max_l_tile=None, out_dtype=jnp.float32,
                           compute_dtype=jnp.bfloat16):
    """x: (N, C_in, L) float32. Returns (N, C_out, L) in `out_dtype` (default f32,
    matching the PyTorch module)."""
    N, C_in, L = x.shape
    v, g, b1 = params["v"], params["g"], params["b1"]
    wd, bd = params["wd"], params["bd"]
    has_downsample = wd is not None
    C_out = v.shape[0]
    K = kernel_size
    assert v.shape == (C_out, C_in, K)
    assert stride == 1 and padding == (K - 1) * dilation and padding > 0, (
        "TCN config (stride=1, padding=(K-1)*dilation) required for the residual add")
    if not has_downsample:
        assert C_in == C_out

    # ---- weight_norm (f32 math), then flatten taps: Wm[o, t*C_in + c] = w1[o, c, t].
    v_norm = jnp.sqrt(jnp.sum(v * v, axis=(1, 2), keepdims=True))
    w1 = g * v / v_norm                                             # (C_out, C_in, K)
    w_mat = jnp.transpose(w1, (0, 2, 1)).reshape(C_out, K * C_in).astype(compute_dtype)

    # ---- causal halo width: `padding` rounded up to a 128-lane multiple.
    P = -(-padding // 128) * 128

    # ---- generation-aware VMEM budget -> lane tile width tl (multiple of P).
    try:
        vmem_cap = int(pltpu.get_tpu_info().vmem_capacity_bytes)
    except Exception:
        vmem_cap = 64 * 1024 * 1024                                 # conservative fallback
    vmem_limit = max(32 * 1024 * 1024,
                     min((vmem_cap * 3) // 4, 112 * 1024 * 1024))   # ~48 MiB v7x, ~96 MiB v5e/v6e
    out_isz = jnp.dtype(out_dtype).itemsize
    cmp_isz = jnp.dtype(compute_dtype).itemsize
    # bytes of VMEM per output lane column: double-buffered x/out tiles + tap slab + f32 temps
    per_lane = (2 * cmp_isz * C_in * 2          # main x tile (2 buffers)
                + out_isz * C_out * 2           # output tile (2 buffers)
                + cmp_isz * K * C_in            # stacked-tap slab
                + 4 * C_out                     # conv accumulator (f32)
                + 4 * C_out)                    # residual / epilogue temp (f32)
    budget = (vmem_limit * 3) // 5
    tl_cap = max(P, min(((budget // per_lane) // P) * P, 8192))
    if max_l_tile is not None:
        tl_cap = max(P, min(tl_cap, (max_l_tile // P) * P))

    L_need = -(-L // P) * P                     # L rounded up to a multiple of P
    tl = min(tl_cap, L_need)
    # v7x core-awareness: with a single batch element, split time so both TensorCores
    # get work (harmless extra pipeline steps on single-core v5e/v6e).
    if N == 1 and L_need >= 2 * P:
        tl = min(tl, (-(-(L_need // 2) // P)) * P)
    num_j = -(-L_need // tl)
    L_t = num_j * tl
    ratio = tl // P

    # ---- single padded bf16 copy of x: P causal zeros on the left, zeros to L_t on the right.
    xp = jnp.pad(x, ((0, 0), (0, 0), (P, L_t - L))).astype(compute_dtype)

    b1_col = b1.reshape(C_out, 1).astype(jnp.float32)

    # Two lane-dense Blocked views of the SAME padded array form the overlapping window.
    # TODO(synk): collapse into a single overlapping pl.Element((tl + P)) input block once
    # element-offset input windows are validated on the target jax/Mosaic version.
    operands = [xp, xp, w_mat]
    in_specs = [
        pl.BlockSpec((1, C_in, tl), lambda n, j: (n, 0, j)),
        pl.BlockSpec((1, C_in, P), lambda n, j: (n, 0, (j + 1) * ratio)),
        pl.BlockSpec((C_out, K * C_in), lambda n, j: (0, 0)),
    ]
    if has_downsample:
        operands.append(wd.astype(compute_dtype))
        in_specs.append(pl.BlockSpec((C_out, C_in), lambda n, j: (0, 0)))
    operands.append(b1_col)
    in_specs.append(pl.BlockSpec((C_out, 1), lambda n, j: (0, 0)))
    if has_downsample:
        operands.append(bd.reshape(C_out, 1).astype(jnp.float32))
        in_specs.append(pl.BlockSpec((C_out, 1), lambda n, j: (0, 0)))

    kernel = _make_temporal_block_kernel(K, dilation, padding, P, tl, has_downsample)

    out = pl.pallas_call(
        kernel,
        out_shape=jax.ShapeDtypeStruct((N, C_out, L_t), out_dtype),
        grid_spec=pltpu.PrefetchScalarGridSpec(
            num_scalar_prefetch=0,
            grid=(N, num_j),
            in_specs=in_specs,
            out_specs=pl.BlockSpec((1, C_out, tl), lambda n, j: (n, 0, j)),
        ),
        compiler_params=pltpu.CompilerParams(
            dimension_semantics=("parallel", "parallel"),
            vmem_limit_bytes=int(vmem_limit),
        ),
    )(*operands)

    return out[:, :, :L] if L_t != L else out


def _reference(x, params, *, kernel_size, stride, padding, dilation):
    """Pure-JAX f32 reference matching the PyTorch forward."""
    v, g, b1 = params["v"], params["g"], params["b1"]
    v_norm = jnp.sqrt(jnp.sum(v * v, axis=(1, 2), keepdims=True))
    w = g * v / v_norm
    y = jax.lax.conv_general_dilated(
        x, w, window_strides=(stride,), padding=[(padding, padding)],
        rhs_dilation=(dilation,), dimension_numbers=("NCH", "OIH", "NCH"))
    y = y + b1[None, :, None]
    y = y[:, :, :-padding]                                  # Chomp1d
    y = jnp.maximum(y, 0.0)                                 # relu1
    if params["wd"] is None:
        res = x                                             # downsample is None -> identity
    else:
        res = jnp.einsum("ncl,oc->nol", x, params["wd"]) + params["bd"][None, :, None]
    return jnp.maximum(y + res, 0.0)                        # final relu


def init_params(key, n_inputs, n_outputs, kernel_size):
    k1, k2, k3, k4, k5 = jax.random.split(key, 5)
    v = jax.random.normal(k1, (n_outputs, n_inputs, kernel_size), jnp.float32) * 0.1
    g = jax.random.normal(k2, (n_outputs, 1, 1), jnp.float32) * 0.1 + 1.0
    b1 = jax.random.normal(k3, (n_outputs,), jnp.float32) * 0.1
    if n_inputs != n_outputs:
        wd = jax.random.normal(k4, (n_outputs, n_inputs), jnp.float32) * 0.1
        bd = jax.random.normal(k5, (n_outputs,), jnp.float32) * 0.1
    else:
        wd, bd = None, None                                 # PyTorch: downsample is None
    return {"v": v, "g": g, "b1": b1, "wd": wd, "bd": bd}


if __name__ == "__main__":
    root = jax.random.PRNGKey(0)

    # (name, N, C_in, C_out, L, kernel_size, dilation, max_l_tile, out_dtype)
    cases = [
        ("downsample-residual", 2, 4, 8, 16, 3, 2, None, jnp.float32),
        ("identity-residual",   2, 8, 8, 16, 3, 1, None, jnp.float32),
        ("tiled-long-seq",      2, 4, 8, 320, 3, 2, 128, jnp.float32),
        ("bf16-output",         1, 4, 8, 320, 3, 2, 128, jnp.bfloat16),
    ]
    for i, (name, N, C_in, C_out, L, K, dil, mtl, odt) in enumerate(cases):
        stride, padding = 1, (K - 1) * dil
        kx, kp = jax.random.split(jax.random.fold_in(root, i))
        x = jax.random.normal(kx, (N, C_in, L), jnp.float32)
        params = init_params(kp, C_in, C_out, K)

        y = temporal_block_forward(x, params, kernel_size=K, stride=stride,
                                   padding=padding, dilation=dil,
                                   max_l_tile=mtl, out_dtype=odt)
        y = jax.block_until_ready(y)
        assert y.shape == (N, C_out, L), (name, y.shape)
        assert y.dtype == jnp.dtype(odt), (name, y.dtype)

        y_ref = _reference(x, params, kernel_size=K, stride=stride,
                           padding=padding, dilation=dil)
        # bf16 MXU inputs with f32 accumulation -> loosened tolerance vs f32 reference;
        # a bit looser again when the output itself is stored in bf16.
        tol = 8e-2 if jnp.dtype(odt) == jnp.dtype(jnp.bfloat16) else 5e-2
        err = float(jnp.max(jnp.abs(y.astype(jnp.float32) - y_ref)))
        assert jnp.allclose(y.astype(jnp.float32), y_ref, atol=tol, rtol=tol), (name, err)

    print("KERNEL_OK")
</pallas_src>

<mosaic_0001>
module attributes {stable_mosaic.version = 11 : i64} {
  func.func @kernel(%arg0: i32, %arg1: i32, %arg2: memref<1x4x128xbf16, #tpu.memory_space<vmem>>, %arg3: memref<1x4x128xbf16, #tpu.memory_space<vmem>>, %arg4: memref<8x12xbf16, #tpu.memory_space<vmem>>, %arg5: memref<8x4xbf16, #tpu.memory_space<vmem>>, %arg6: memref<8x1xf32, #tpu.memory_space<vmem>>, %arg7: memref<8x1xf32, #tpu.memory_space<vmem>>, %arg8: memref<1x8x128xf32, #tpu.memory_space<vmem>>) attributes {dimension_semantics = [#tpu.dimension_semantics<parallel>, #tpu.dimension_semantics<parallel>], iteration_bounds = array<i64: 2, 1>, scalar_prefetch = 0 : i64, scratch_operands = 0 : i64, tpu.core_type = #tpu.core_type<tc>, window_params = [{transform_indices = @transform_0, window_bounds = array<i64: 1, 4, 128>}, {transform_indices = @transform_1, window_bounds = array<i64: 1, 4, 128>}, {pipeline_mode = #tpu.pipeline_mode<synchronous>, transform_indices = @transform_2, window_bounds = array<i64: 8, 12>}, {pipeline_mode = #tpu.pipeline_mode<synchronous>, transform_indices = @transform_3, window_bounds = array<i64: 8, 4>}, {pipeline_mode = #tpu.pipeline_mode<synchronous>, transform_indices = @transform_4, window_bounds = array<i64: 8, 1>}, {pipeline_mode = #tpu.pipeline_mode<synchronous>, transform_indices = @transform_5, window_bounds = array<i64: 8, 1>}, {transform_indices = @transform_6, window_bounds = array<i64: 1, 8, 128>}]} {
    %c0 = arith.constant 0 : index
    %c0_0 = arith.constant 0 : index
    %c0_1 = arith.constant 0 : index
    %0 = vector.load %arg2[%c0, %c0_0, %c0_1] : memref<1x4x128xbf16, #tpu.memory_space<vmem>>, vector<1x4x128xbf16>
    %1 = vector.shape_cast %0 : vector<1x4x128xbf16> to vector<4x128xbf16>
    %c0_2 = arith.constant 0 : index
    %c0_3 = arith.constant 0 : index
    %c0_4 = arith.constant 0 : index
    %2 = vector.load %arg3[%c0_2, %c0_3, %c0_4] : memref<1x4x128xbf16, #tpu.memory_space<vmem>>, vector<1x4x128xbf16>
    %3 = vector.shape_cast %2 : vector<1x4x128xbf16> to vector<4x128xbf16>
    %4 = vector.extract_strided_slice %1 {offsets = [0, 124], sizes = [4, 4], strides = [1, 1]} : vector<4x128xbf16> to vector<4x4xbf16>
    %5 = vector.extract_strided_slice %3 {offsets = [0, 0], sizes = [4, 124], strides = [1, 1]} : vector<4x128xbf16> to vector<4x124xbf16>
    %6 = tpu.concatenate %4, %5 in 1 : vector<4x4xbf16>, vector<4x124xbf16> -> vector<4x128xbf16>
    %7 = vector.extract_strided_slice %1 {offsets = [0, 126], sizes = [4, 2], strides = [1, 1]} : vector<4x128xbf16> to vector<4x2xbf16>
    %8 = vector.extract_strided_slice %3 {offsets = [0, 0], sizes = [4, 126], strides = [1, 1]} : vector<4x128xbf16> to vector<4x126xbf16>
    %9 = tpu.concatenate %7, %8 in 1 : vector<4x2xbf16>, vector<4x126xbf16> -> vector<4x128xbf16>
    %10 = tpu.concatenate %6, %9, %3 in 0 : vector<4x128xbf16>, vector<4x128xbf16>, vector<4x128xbf16> -> vector<12x128xbf16>
    %c0_5 = arith.constant 0 : index
    %c0_6 = arith.constant 0 : index
    %11 = vector.load %arg4[%c0_5, %c0_6] : memref<8x12xbf16, #tpu.memory_space<vmem>>, vector<8x12xbf16>
    %cst = arith.constant dense<0.000000e+00> : vector<8x128xf32>
    %12 = tpu.matmul %11, %10, %cst {dimension_numbers = #tpu.dot_dimension_numbers<[1], [0], [0], [1], [0, 0, 1, 1], [], []>} : vector<8x12xbf16>, vector<12x128xbf16>, vector<8x128xf32> -> vector<8x128xf32>
    %c0_7 = arith.constant 0 : index
    %c0_8 = arith.constant 0 : index
    %13 = vector.load %arg6[%c0_7, %c0_8] : memref<8x1xf32, #tpu.memory_space<vmem>>, vector<8x1xf32>
    %14 = vector.broadcast %13 : vector<8x1xf32> to vector<8x128xf32>
    %15 = arith.addf %12, %14 : vector<8x128xf32>
    %cst_9 = arith.constant 0.000000e+00 : f32
    %16 = vector.broadcast %cst_9 : f32 to vector<8x128xf32>
    %17 = arith.maximumf %15, %16 : vector<8x128xf32>
    %c0_10 = arith.constant 0 : index
    %c0_11 = arith.constant 0 : index
    %18 = vector.load %arg5[%c0_10, %c0_11] : memref<8x4xbf16, #tpu.memory_space<vmem>>, vector<8x4xbf16>
    %cst_12 = arith.constant dense<0.000000e+00> : vector<8x128xf32>
    %19 = tpu.matmul %18, %3, %cst_12 {dimension_numbers = #tpu.dot_dimension_numbers<[1], [0], [0], [1], [0, 0, 1, 1], [], []>} : vector<8x4xbf16>, vector<4x128xbf16>, vector<8x128xf32> -> vector<8x128xf32>
    %c0_13 = arith.constant 0 : index
    %c0_14 = arith.constant 0 : index
    %20 = vector.load %arg7[%c0_13, %c0_14] : memref<8x1xf32, #tpu.memory_space<vmem>>, vector<8x1xf32>
    %21 = vector.broadcast %20 : vector<8x1xf32> to vector<8x128xf32>
    %22 = arith.addf %19, %21 : vector<8x128xf32>
    %23 = arith.addf %17, %22 : vector<8x128xf32>
    %cst_15 = arith.constant 0.000000e+00 : f32
    %24 = vector.broadcast %cst_15 : f32 to vector<8x128xf32>
    %25 = arith.maximumf %23, %24 : vector<8x128xf32>
    %c0_16 = arith.constant 0 : index
    %c0_17 = arith.constant 0 : index
    %c0_18 = arith.constant 0 : index
    %26 = vector.load %arg8[%c0_16, %c0_17, %c0_18] : memref<1x8x128xf32, #tpu.memory_space<vmem>>, vector<1x8x128xf32>
    %27 = vector.shape_cast %26 : vector<1x8x128xf32> to vector<8x128xf32>
    %28 = vector.shape_cast %25 : vector<8x128xf32> to vector<1x8x128xf32>
    tpu.vector_store %arg8[%c0_16, %c0_17, %c0_18], %28 {strides = array<i32>} : memref<1x8x128xf32, #tpu.memory_space<vmem>>, vector<1x8x128xf32>,
    return
  }
  func.func @transform_0(%arg0: i32, %arg1: i32) -> (i32, i32, i32) {
    %c0_i32 = arith.constant 0 : i32
    %c0_i32_0 = arith.constant 0 : i32
    return %arg0, %c0_i32, %arg1 : i32, i32, i32
  }
  func.func @transform_1(%arg0: i32, %arg1: i32) -> (i32, i32, i32) {
    %c1_i32 = arith.constant 1 : i32
    %0 = arith.addi %arg1, %c1_i32 : i32
    %c1_i32_0 = arith.constant 1 : i32
    %1 = arith.muli %0, %c1_i32_0 : i32
    %c0_i32 = arith.constant 0 : i32
    %c0_i32_1 = arith.constant 0 : i32
    return %arg0, %c0_i32, %1 : i32, i32, i32
  }
  func.func @transform_2(%arg0: i32, %arg1: i32) -> (i32, i32) {
    %c0_i32 = arith.constant 0 : i32
    %c0_i32_0 = arith.constant 0 : i32
    %c0_i32_1 = arith.constant 0 : i32
    return %c0_i32, %c0_i32_0 : i32, i32
  }
  func.func @transform_3(%arg0: i32, %arg1: i32) -> (i32, i32) {
    %c0_i32 = arith.constant 0 : i32
    %c0_i32_0 = arith.constant 0 : i32
    %c0_i32_1 = arith.constant 0 : i32
    return %c0_i32, %c0_i32_0 : i32, i32
  }
  func.func @transform_4(%arg0: i32, %arg1: i32) -> (i32, i32) {
    %c0_i32 = arith.constant 0 : i32
    %c0_i32_0 = arith.constant 0 : i32
    %c0_i32_1 = arith.constant 0 : i32
    return %c0_i32, %c0_i32_0 : i32, i32
  }
  func.func @transform_5(%arg0: i32, %arg1: i32) -> (i32, i32) {
    %c0_i32 = arith.constant 0 : i32
    %c0_i32_0 = arith.constant 0 : i32
    %c0_i32_1 = arith.constant 0 : i32
    return %c0_i32, %c0_i32_0 : i32, i32
  }
  func.func @transform_6(%arg0: i32, %arg1: i32) -> (i32, i32, i32) {
    %c0_i32 = arith.constant 0 : i32
    %c0_i32_0 = arith.constant 0 : i32
    return %arg0, %c0_i32, %arg1 : i32, i32, i32
  }
}

</mosaic_0001>

<llo_original>
// kernel: tpu_custom_call.1
$region0: #{tpu_custom_call.1}
  #allocation0 [shape = 'u32[]', space=smem, size = 0x4, offset = 0x4, fixed_abs, tag = 'smem constant byte address 0x4 - core index']
  #allocation1 [shape = 'u32[72,128]{1,0:T(1,128)}', space=vmem, size = 0x9000, scoped, tag = 'internal scratch']
  %s0 = inlined_call_operand.vmem [shape: bf16[2,4,256], index: 0, kind: input, shape index: {}]
  %s1 = inlined_call_operand.vmem [shape: bf16[2,4,256], index: 1, kind: input, shape index: {}]
  %s2 = inlined_call_operand.vmem [shape: bf16[8,12], index: 2, kind: input, shape index: {}]
  %s3 = inlined_call_operand.vmem [shape: bf16[8,4], index: 3, kind: input, shape index: {}]
  %s4 = inlined_call_operand.vmem [shape: f32[8,1], index: 4, kind: input, shape index: {}]
  %s5 = inlined_call_operand.vmem [shape: f32[8,1], index: 5, kind: input, shape index: {}]
  %s6 = inlined_call_operand.hbm [shape: f32[2,8,128], index: 6, kind: output, shape index: {}]
  %s7 = sld [smem:[#allocation0]]
  $region57: #{tpu_custom_call.1} parent=0
    _
  %s9 = ssub.s32 1, %s7
  %s10 = scalar_select 0, %s9, %s7
  $region1: #{tpu_custom_call.1} parent=0
    #allocation2 [shape = 'u8[8192]{0}', space=vmem, size = 0x2000, scoped, tag = 'output window, operand 0']
    #allocation3 [shape = 's32[2]{0}', space=sflag, size = 0x8, scoped, tag = 'scoped memory for tpu_custom_call.1']
    %11 = vsyncpa [#allocation3], 0
    %s12 = scalar_lea.sflag [#allocation3], 1
    %13 = vsyncpa %s12, 0
    loop: start=0, step=1, limit=4
    $region2: #{tpu_custom_call.1} parent=1 // loop_pre_header
      _
    $region3: #{tpu_custom_call.1} parent=1 // loop_header
      %s15 = sphi 0, %s19
      %p16 = scmp.ge.s32.totalorder %s15, 4
      %s22 = sphi 0, %s34
      %s23 = sphi 0, %s30
      %s24 = sphi 0, %s22
      %s25 = sphi 0, %s23
      %s26 = sphi 0, %s24
      %s27 = sphi 0, %s25
      %s39 = sphi 0, %s41
      %s42 = sphi 0, %s39
      %s43 = sphi 0, %s42
      %s59 = sphi 0, %s43
      %s69 = sphi 0, %s71
      %s72 = sphi 0, %s69
      %s73 = sphi 0, %s72
      %s89 = sphi 0, %s73
      %s93 = sphi 0, %s93
      %s95 = sphi 0, %s93
      %s96 = sphi 0, %s95
      %s110 = sphi 0, %s96
      %s114 = sphi 0, %s114
      %s116 = sphi 0, %s114
      %s117 = sphi 0, %s116
      %s131 = sphi 0, %s117
      %s135 = sphi 0, %s135
      %s137 = sphi 0, %s135
      %s138 = sphi 0, %s137
      %s152 = sphi 0, %s138
      %s156 = sphi 0, %s156
      %s158 = sphi 0, %s156
      %s159 = sphi 0, %s158
      %s173 = sphi 0, %s159
      %s181 = sphi 0, %s183
      %s184 = sphi 0, %s181
      %s185 = sphi 0, %s184
      %s201 = sphi 0, %s185
    $region4: #{tpu_custom_call.1} parent=1 // loop_header_branch
      %18 = sbr.rel (%p16) target = $region8
    $region5: #{tpu_custom_call.1} parent=1 // loop_body
      %s20 = ssub.s32 %s15, 1
      %s21 = ssub.s32 %s15, 2
      %s28 = sadd.s32 1, %s23
      %p29 = scmp.ge.s32.totalorder %s28, 1
      %s30 = scalar_select %p29, 0, %s28
      %s31 = sadd.s32 1, %s22
      %s32 = scalar_select %p29, %s31, %s22
      %p33 = scmp.ge.s32.totalorder %s32, 2
      %s34 = scalar_select %p33, 0, %s32
      %s35 = ssub.s32 %s22, %s34
      %s36 = ssub.s32 %s23, %s30
      %s37 = sor.u32 %s35, %s36
      %p38 = scmp.eq.s32.totalorder %s37, 0
      %s40 = sadd.s32 %s39, 1
      %s41 = scalar_select %p38, %s39, %s40
      %p44 = pneg %p38
      %p45 = scmp.eq.s32.totalorder %s15, 1
      %p46 = por %p44, %p45
      %p47 = scmp.ne.s32.totalorder %s39, %s42
      %p48 = scmp.eq.s32.totalorder %s15, 0
      %p49 = por %p47, %p48
      %p50 = scmp.ne.s32.totalorder %s39, %s42
      %p51 = scmp.eq.s32.totalorder %s20, 1
      %p52 = por %p50, %p51
      %p53 = scmp.ne.s32.totalorder %s42, %s43
      %p54 = scmp.eq.s32.totalorder %s20, 0
      %p55 = por %p53, %p54
      %p56 = scmp.ne.s32.totalorder %s42, %s43
      %p57 = scmp.eq.s32.totalorder %s21, 1
      %p58 = por %p56, %p57
      %p60 = scmp.ne.s32.totalorder %s43, %s59
      %p61 = scmp.eq.s32.totalorder %s21, 0
      %p62 = por %p60, %p61
      %s63 = sadd.s32 %s23, 1
      %s64 = sadd.s32 %s30, 1
      %s65 = ssub.s32 %s22, %s34
      %s66 = ssub.s32 %s63, %s64
      %s67 = sor.u32 %s65, %s66
      %p68 = scmp.eq.s32.totalorder %s67, 0
      %s70 = sadd.s32 %s69, 1
      %s71 = scalar_select %p68, %s69, %s70
      %p74 = pneg %p68
      %p75 = scmp.eq.s32.totalorder %s15, 1
      %p76 = por %p74, %p75
      %p77 = scmp.ne.s32.totalorder %s69, %s72
      %p78 = scmp.eq.s32.totalorder %s15, 0
      %p79 = por %p77, %p78
      %p80 = scmp.ne.s32.totalorder %s69, %s72
      %p81 = scmp.eq.s32.totalorder %s20, 1
      %p82 = por %p80, %p81
      %p83 = scmp.ne.s32.totalorder %s72, %s73
      %p84 = scmp.eq.s32.totalorder %s20, 0
      %p85 = por %p83, %p84
      %p86 = scmp.ne.s32.totalorder %s72, %s73
      %p87 = scmp.eq.s32.totalorder %s21, 1
      %p88 = por %p86, %p87
      %p90 = scmp.ne.s32.totalorder %s73, %s89
      %p91 = scmp.eq.s32.totalorder %s21, 0
      %p92 = por %p90, %p91
      %s94 = sadd.s32 %s93, 1
      %p97 = scmp.eq.s32.totalorder %s15, 1
      %p98 = scmp.ne.s32.totalorder %s93, %s95
      %p99 = scmp.eq.s32.totalorder %s15, 0
      %p100 = por %p98, %p99
      %p101 = scmp.ne.s32.totalorder %s93, %s95
      %p102 = scmp.eq.s32.totalorder %s20, 1
      %p103 = por %p101, %p102
      %p104 = scmp.ne.s32.totalorder %s95, %s96
      %p105 = scmp.eq.s32.totalorder %s20, 0
      %p106 = por %p104, %p105
      %p107 = scmp.ne.s32.totalorder %s95, %s96
      %p108 = scmp.eq.s32.totalorder %s21, 1
      %p109 = por %p107, %p108
      %p111 = scmp.ne.s32.totalorder %s96, %s110
      %p112 = scmp.eq.s32.totalorder %s21, 0
      %p113 = por %p111, %p112
      %s115 = sadd.s32 %s114, 1
      %p118 = scmp.eq.s32.totalorder %s15, 1
      %p119 = scmp.ne.s32.totalorder %s114, %s116
      %p120 = scmp.eq.s32.totalorder %s15, 0
      %p121 = por %p119, %p120
      %p122 = scmp.ne.s32.totalorder %s114, %s116
      %p123 = scmp.eq.s32.totalorder %s20, 1
      %p124 = por %p122, %p123
      %p125 = scmp.ne.s32.totalorder %s116, %s117
      %p126 = scmp.eq.s32.totalorder %s20, 0
      %p127 = por %p125, %p126
      %p128 = scmp.ne.s32.totalorder %s116, %s117
      %p129 = scmp.eq.s32.totalorder %s21, 1
      %p130 = por %p128, %p129
      %p132 = scmp.ne.s32.totalorder %s117, %s131
      %p133 = scmp.eq.s32.totalorder %s21, 0
      %p134 = por %p132, %p133
      %s136 = sadd.s32 %s135, 1
      %p139 = scmp.eq.s32.totalorder %s15, 1
      %p140 = scmp.ne.s32.totalorder %s135, %s137
      %p141 = scmp.eq.s32.totalorder %s15, 0
      %p142 = por %p140, %p141
      %p143 = scmp.ne.s32.totalorder %s135, %s137
      %p144 = scmp.eq.s32.totalorder %s20, 1
      %p145 = por %p143, %p144
      %p146 = scmp.ne.s32.totalorder %s137, %s138
      %p147 = scmp.eq.s32.totalorder %s20, 0
      %p148 = por %p146, %p147
      %p149 = scmp.ne.s32.totalorder %s137, %s138
      %p150 = scmp.eq.s32.totalorder %s21, 1
      %p151 = por %p149, %p150
      %p153 = scmp.ne.s32.totalorder %s138, %s152
      %p154 = scmp.eq.s32.totalorder %s21, 0
      %p155 = por %p153, %p154
      %s157 = sadd.s32 %s156, 1
      %p160 = scmp.eq.s32.totalorder %s15, 1
      %p161 = scmp.ne.s32.totalorder %s156, %s158
      %p162 = scmp.eq.s32.totalorder %s15, 0
      %p163 = por %p161, %p162
      %p164 = scmp.ne.s32.totalorder %s156, %s158
      %p165 = scmp.eq.s32.totalorder %s20, 1
      %p166 = por %p164, %p165
      %p167 = scmp.ne.s32.totalorder %s158, %s159
      %p168 = scmp.eq.s32.totalorder %s20, 0
      %p169 = por %p167, %p168
      %p170 = scmp.ne.s32.totalorder %s158, %s159
      %p171 = scmp.eq.s32.totalorder %s21, 1
      %p172 = por %p170, %p171
      %p174 = scmp.ne.s32.totalorder %s159, %s173
      %p175 = scmp.eq.s32.totalorder %s21, 0
      %p176 = por %p174, %p175
      %s177 = ssub.s32 %s22, %s34
      %s178 = ssub.s32 %s23, %s30
      %s179 = sor.u32 %s177, %s178
      %p180 = scmp.eq.s32.totalorder %s179, 0
      %s182 = sadd.s32 %s181, 1
      %s183 = scalar_select %p180, %s181, %s182
      %p186 = pneg %p180
      %p187 = scmp.eq.s32.totalorder %s15, 1
      %p188 = por %p186, %p187
      %p189 = scmp.ne.s32.totalorder %s181, %s184
      %p190 = scmp.eq.s32.totalorder %s15, 0
      %p191 = por %p189, %p190
      %p192 = scmp.ne.s32.totalorder %s181, %s184
      %p193 = scmp.eq.s32.totalorder %s20, 1
      %p194 = por %p192, %p193
      %p195 = scmp.ne.s32.totalorder %s184, %s185
      %p196 = scmp.eq.s32.totalorder %s20, 0
      %p197 = por %p195, %p196
      %p198 = scmp.ne.s32.totalorder %s184, %s185
      %p199 = scmp.eq.s32.totalorder %s21, 1
      %p200 = por %p198, %p199
      %p202 = scmp.ne.s32.totalorder %s185, %s201
      %p203 = scmp.eq.s32.totalorder %s21, 0
      %p204 = por %p202, %p203
      %p205 = scmp.le.s32.totalorder 1, %s15
      %p206 = scmp.lt.s32.totalorder %s15, 3
      %p207 = pnand %p205, %p206
      %p208 = pneg %p207
      // Predicated region
      $region9: #{tpu_custom_call.1} parent=5 // pred_check
        _
      $region10: #{tpu_custom_call.1} parent=5 // pred_check_branch
        %210 = sbr.rel (%p207) target = $region12
      $region11: #{tpu_custom_call.1} parent=5 // pred_region
        %s211 = ssub.s32 %s15, 1
        // Predicated region
        $region13: #{tpu_custom_call.1} parent=11 // pred_check
          %p212 = pneg %p106
        $region14: #{tpu_custom_call.1} parent=11 // pred_check_branch
          %214 = sbr.rel (%p212) target = $region16
        $region15: #{tpu_custom_call.1} parent=11 // pred_region
          _
        $region16: #{tpu_custom_call.1} parent=11 // pred_fallthru
          _
        // Predicated region
        $region17: #{tpu_custom_call.1} parent=11 // pred_check
          %p215 = pneg %p127
        $region18: #{tpu_custom_call.1} parent=11 // pred_check_branch
          %217 = sbr.rel (%p215) target = $region20
        $region19: #{tpu_custom_call.1} parent=11 // pred_region
          _
        $region20: #{tpu_custom_call.1} parent=11 // pred_fallthru
          _
        // Predicated region
        $region21: #{tpu_custom_call.1} parent=11 // pred_check
          %p218 = pneg %p148
        $region22: #{tpu_custom_call.1} parent=11 // pred_check_branch
          %220 = sbr.rel (%p218) target = $region24
        $region23: #{tpu_custom_call.1} parent=11 // pred_region
          _
        $region24: #{tpu_custom_call.1} parent=11 // pred_fallthru
          _
        // Predicated region
        $region25: #{tpu_custom_call.1} parent=11 // pred_check
          %p221 = pneg %p169
        $region26: #{tpu_custom_call.1} parent=11 // pred_check_branch
          %223 = sbr.rel (%p221) target = $region28
        $region27: #{tpu_custom_call.1} parent=11 // pred_region
          _
        $region28: #{tpu_custom_call.1} parent=11 // pred_fallthru
          _
      $region12: #{tpu_custom_call.1} parent=5 // pred_fallthru
        _
      %p224 = scmp.lt.s32.totalorder %s15, 2
      // Predicated region
      $region29: #{tpu_custom_call.1} parent=5 // pred_check
        %p225 = pneg %p224
      $region30: #{tpu_custom_call.1} parent=5 // pred_check_branch
        %227 = sbr.rel (%p225) target = $region32
      $region31: #{tpu_custom_call.1} parent=5 // pred_region
        // Predicated region
        $region33: #{tpu_custom_call.1} parent=31 // pred_check
          %p228 = pneg %p49
        $region34: #{tpu_custom_call.1} parent=31 // pred_check_branch
          %230 = sbr.rel (%p228) target = $region36
        $region35: #{tpu_custom_call.1} parent=31 // pred_region
          %p231 = scmp.lt.s32.totalorder %s22, 1
          %s232 = scalar_select %p231, %s22, 1
          %p233 = scmp.lt.s32.totalorder %s23, 1
          %s234 = scalar_select %p233, %s23, 1
          %s235 = smul.addr %s232, 2
          %s236 = sadd.s32 %s234, %s235
          %s237 = smul.addr %s236, 2
          %s238 = scalar_lea.vmem %s0, %s237
        $region36: #{tpu_custom_call.1} parent=31 // pred_fallthru
          _
        // Predicated region
        $region37: #{tpu_custom_call.1} parent=31 // pred_check
          %p239 = pneg %p79
        $region38: #{tpu_custom_call.1} parent=31 // pred_check_branch
          %241 = sbr.rel (%p239) target = $region40
        $region39: #{tpu_custom_call.1} parent=31 // pred_region
          %s242 = sadd.s32 %s23, 1
          %p243 = scmp.lt.s32.totalorder %s22, 1
          %s244 = scalar_select %p243, %s22, 1
          %p245 = scmp.lt.s32.totalorder %s242, 1
          %s246 = scalar_select %p245, %s242, 1
          %s247 = smul.addr %s244, 2
          %s248 = sadd.s32 %s246, %s247
          %s249 = smul.addr %s248, 2
          %s250 = scalar_lea.vmem %s1, %s249
          %s251 = sadd.s32 %s23, 1
        $region40: #{tpu_custom_call.1} parent=31 // pred_fallthru
          _
      $region32: #{tpu_custom_call.1} parent=5 // pred_fallthru
        _
      %p252 = scmp.le.s32.totalorder 1, %s15
      %p253 = scmp.lt.s32.totalorder %s15, 3
      %p254 = pnand %p252, %p253
      %p255 = pneg %p254
      // Predicated region
      $region41: #{tpu_custom_call.1} parent=5 // pred_check
        _
      $region42: #{tpu_custom_call.1} parent=5 // pred_check_branch
        %257 = sbr.rel (%p254) target = $region44
      $region43: #{tpu_custom_call.1} parent=5 // pred_region
        %s258 = ssub.s32 %s15, 1
        %p259 = scmp.lt.s32.totalorder %s24, 1
        %s260 = scalar_select %p259, %s24, 1
        %p261 = scmp.lt.s32.totalorder %s25, 1
        %s262 = scalar_select %p261, %s25, 1
        %s263 = smul.addr %s260, 2
        %s264 = sadd.s32 %s262, %s263
        %s265 = smul.addr %s264, 2
        %s266 = scalar_lea.vmem %s0, %s265
        %p267 = pneg %p55
        %p268 = pneg %p52
        %s269 = sadd.s32 %s25, 1
        %p270 = scmp.lt.s32.totalorder %s24, 1
        %s271 = scalar_select %p270, %s24, 1
        %p272 = scmp.lt.s32.totalorder %s269, 1
        %s273 = scalar_select %p272, %s269, 1
        %s274 = smul.addr %s271, 2
        %s275 = sadd.s32 %s273, %s274
        %s276 = smul.addr %s275, 2
        %s277 = scalar_lea.vmem %s1, %s276
        %p278 = pneg %p85
        %p279 = pneg %p82
        %p280 = pneg %p106
        %p281 = pneg %p103
        %p282 = pneg %p127
        %p283 = pneg %p124
        %p284 = pneg %p148
        %p285 = pneg %p145
        %p286 = pneg %p169
        %p287 = pneg %p166
        %p288 = pneg %p197
        %p289 = pneg %p194
        %s290 = sand.u32 %s184, 1
        %s291 = scalar_lea.sflag [#allocation3], %s290
        %s292 = sand.u32 %s184, 1
        %s293 = smul.addr %s292, 8
        %s294 = scalar_lea.vmem [#allocation2], %s293
        %p295 = scmp.lt.s32.totalorder %s24, 1
        %s296 = scalar_select %p295, %s24, 1
        %p297 = scmp.lt.s32.totalorder %s25, 1
        %s298 = scalar_select %p297, %s25, 1
        %s299 = smul.addr %s296, 2
        %s300 = sadd.s32 %s298, %s299
        %s301 = smul.addr %s300, 2
        %s302 = scalar_lea.vmem %s0, %s301
        %s303 = sadd.s32 %s25, 1
        %p304 = scmp.lt.s32.totalorder %s24, 1
        %s305 = scalar_select %p304, %s24, 1
        %p306 = scmp.lt.s32.totalorder %s303, 1
        %s307 = scalar_select %p306, %s303, 1
        %s308 = smul.addr %s305, 2
        %s309 = sadd.s32 %s307, %s308
        %s310 = smul.addr %s309, 2
        %s311 = scalar_lea.vmem %s1, %s310
        %s312 = sadd.s32 %s25, 1
        %v314 = vld [vmem:[%s302] sm:$0x3]
        %v315 = vld [vmem:[%s311] sm:$0x3]
        %317 = vst [vmem:[#allocation1] ss:$4 sm:$0xff] %v314
        %v318 = vld.sshfl [vmem:[#allocation1] sm:$0xff pattern:$0x73625140]
        %320 = vrot.lane.b32.xlu0 %v318, 4
        %v321 = vpop.permute.xlu0 %320
        %323 = vst [vmem:[#allocation1] ss:$4 sm:$0xff] %v315
        %v324 = vld.sshfl [vmem:[#allocation1] sm:$0xff pattern:$0x73625140]
        %326 = vrot.lane.b32.xlu0 %v324, 4
        %v327 = vpop.permute.xlu0 %326
        %vm328 = vcmask 31744
        %v331 = vsel %vm328, %v321, %v327
        %332 = vst [vmem:[#allocation1] ss:$4 sm:$0xff] %v314
        %v333 = vld.sshfl [vmem:[#allocation1] sm:$0xff pattern:$0x73625140]
        %335 = vrot.lane.b32.xlu0 %v333, 2
        %v336 = vpop.permute.xlu0 %335
        %337 = vst [vmem:[#allocation1] ss:$4 sm:$0xff] %v315
        %v338 = vld.sshfl [vmem:[#allocation1] sm:$0xff pattern:$0x73625140]
        %340 = vrot.lane.b32.xlu0 %v338, 2
        %v341 = vpop.permute.xlu0 %340
        %vm342 = vcmask 15360
        %v345 = vsel %vm342, %v336, %v341
        %v347 = vrot.slane %v345, 6
        %s348 = scalar_lea.vmem [#allocation1], 2
        %349 = vst [vmem:[%s348] ss:$4 sm:$0xff] %v315
        %v350 = vld.sshfl [vmem:[#allocation1] sm:$0xff pattern:$0x73625140]
        %vm351 = vcmask 1041408
        %v353 = vsel %vm351, %v331, %v347
        %vm354 = vcmask 1043456
        %v355 = vsel %vm354, %v353, %v350
        %v356 = vld [vmem:[%s2] sm:$0xf]
        %v357 = vld [vmem:[%s4] sm:$0xff]
        %359 = vset.pattern.permute.xlu0 0
        %360 = vperm.xlu0 %359, %v357
        %v361 = vpop.permute.xlu0 %360
        %vm363 = vcmask 97280
        %v365 = vsel %vm363, %v356, 0
        %vm367 = vcmask 1045504
        %v368 = vsel %vm367, %v355, 0
        %370 = vmatpush.bf16.msra.mxu0 0
        %371 = vmatpush.bf16.msra.mxu0 0
        %372 = vmatpush.bf16.msra.mxu0 0
        %373 = vmatpush.bf16.msra.mxu0 0
        %374 = vmatpush.bf16.msra.mxu0 0
        %375 = vmatpush.bf16.msra.mxu0 0
        %376 = vmatpush.bf16.msra.mxu0 0
        %377 = vmatpush.bf16.msra.mxu0 %v368
        %378 = vmatmul.bf16.gmra.mxu0 %v365
        %v379 = vpop.f32.mrf.mxu0
        %v380 = vadd.f32 %v361, %v379
        %v381 = vpop.f32.mrf.mxu0
        %382 = vdwg.mxu0
        %v383 = vmax.f32 %v380, 0.0
        %v384 = vld [vmem:[%s3] sm:$0xf]
        %v385 = vld [vmem:[%s5] sm:$0xff]
        %387 = vset.pattern.permute.xlu0 0
        %388 = vperm.xlu0 %387, %v385
        %v389 = vpop.permute.xlu0 %388
        %v392 = vsel %vm328, %v384, 0
        %v394 = vsel %vm351, %v315, 0
        %396 = vmatpush.bf16.msra.mxu0 0
        %397 = vmatpush.bf16.msra.mxu0 0
        %398 = vmatpush.bf16.msra.mxu0 0
        %399 = vmatpush.bf16.msra.mxu0 0
        %400 = vmatpush.bf16.msra.mxu0 0
        %401 = vmatpush.bf16.msra.mxu0 0
        %402 = vmatpush.bf16.msra.mxu0 0
        %403 = vmatpush.bf16.msra.mxu0 %v394
        %404 = vmatmul.bf16.gmra.mxu0 %v392
        %v405 = vpop.f32.mrf.mxu0
        %v406 = vadd.f32 %v389, %v405
        %v407 = vpop.f32.mrf.mxu0
        %408 = vdwg.mxu0
        %v409 = vadd.f32 %v383, %v406
        %v410 = vmax.f32 %v409, 0.0
        %411 = vst [vmem:[%s294] sm:$0xff] %v410
        %s412 = sand.u32 %s184, 1
        %s413 = scalar_lea.sflag [#allocation3], %s412
        %s414 = sand.u32 %s184, 1
        %s415 = smul.addr %s414, 8
        %s416 = scalar_lea.vmem [#allocation2], %s415
        // Predicated region
        $region45: #{tpu_custom_call.1} parent=43 // pred_check
          %p417 = pneg %p194
        $region46: #{tpu_custom_call.1} parent=43 // pred_check_branch
          %419 = sbr.rel (%p417) target = $region48
        $region47: #{tpu_custom_call.1} parent=43 // pred_region
          %421 = vsyncadd %s413, 0
          %s422 = sadd.s32 %s25, %s24
          %s423 = smul.addr %s422, 8
          %s424 = scalar_lea.hbm %s6, %s423
          %s426 = sshll.u32 %s416, 4
          %s427 = int_to_ptr.vmem [resolvable:$true] %s426
          %s428 = sshll.u32 %s424, 4
          %s429 = int_to_ptr.hbm [resolvable:$true] %s428
          %431 = dma.vmem_to_hbm [thread:$0]  %s427, 128, %s429, %s413
        $region48: #{tpu_custom_call.1} parent=43 // pred_fallthru
          _
      $region44: #{tpu_custom_call.1} parent=5 // pred_fallthru
        _
      %p432 = scmp.le.s32.totalorder 2, %s15
      // Predicated region
      $region49: #{tpu_custom_call.1} parent=5 // pred_check
        %p433 = pneg %p432
      $region50: #{tpu_custom_call.1} parent=5 // pred_check_branch
        %435 = sbr.rel (%p433) target = $region52
      $region51: #{tpu_custom_call.1} parent=5 // pred_region
        %s436 = ssub.s32 %s15, 2
        // Predicated region
        $region53: #{tpu_custom_call.1} parent=51 // pred_check
          %p437 = pneg %p200
        $region54: #{tpu_custom_call.1} parent=51 // pred_check_branch
          %439 = sbr.rel (%p437) target = $region56
        $region55: #{tpu_custom_call.1} parent=51 // pred_region
          %s440 = sand.u32 %s185, 1
          %s441 = scalar_lea.sflag [#allocation3], %s440
          %s442 = sand.u32 %s185, 1
          %s443 = smul.addr %s442, 8
          %s444 = scalar_lea.vmem [#allocation2], %s443
          %446 = dma.done %s441, 128
        $region56: #{tpu_custom_call.1} parent=51 // pred_fallthru
          _
      $region52: #{tpu_custom_call.1} parent=5 // pred_fallthru
        _
    $region6: #{tpu_custom_call.1} parent=1 // loop_footer
      %s19 = sadd.s32 1, %s15
    $region7: #{tpu_custom_call.1} parent=1 // loop_footer_branch
      %14 = sbr.rel target = $region3
    $region8: #{tpu_custom_call.1} parent=1 // loop_exit
      _
    %447 = vsyncpa [#allocation3], 1
    %s448 = scalar_lea.sflag [#allocation3], 1
    %449 = vsyncpa %s448, 1

</llo_original>
